<compile_context>
chip_gen: v5e
topology: v5e:2x2
jax: 0.10.0
libtpu: 0.0.40
codegen_flags: <defaults>
</compile_context>

<pallas_src>
import functools

import jax
import jax.numpy as jnp
from jax.experimental import pallas as pl
from jax.experimental.pallas import tpu as pltpu


_VMEM_BUDGET = 24 * 1024 * 1024   # conservative working-set cap (v5e/v6e/v7x)
_VMEM_LIMIT = 32 * 1024 * 1024    # scoped VMEM limit requested from Mosaic


def _round_up(x: int, m: int) -> int:
    return (x + m - 1) // m * m


def _pick_batch_tile(batch: int, block_b: int) -> int:
    """Batch tile: multiple of 8, <= block_b, and (when possible) small enough
    that there are >= 2 batch tiles so v7x megacore can use both TCs."""
    b8 = _round_up(batch, 8)
    if b8 <= 8:
        return 8
    half = _round_up((batch + 1) // 2, 8)
    return max(8, min(block_b, half, b8))


def _extract_heads(y, head_stride: int):
    """y: [tb, o_block] f32 with heads at column offsets 0/hs/2hs (+bias).

    Returns y1 + y2**2 + y3**3 with shape [tb, 1] (head_stride == 1) or
    [tb, head_stride] (lane-aligned packing for O > 1).
    """
    if head_stride == 1:
        # Heads live in lanes 0,1,2 -> one-hot lane masks + lane reductions.
        lane = jax.lax.broadcasted_iota(jnp.int32, y.shape, 1)
        y1 = jnp.sum(jnp.where(lane == 0, y, 0.0), axis=1, keepdims=True)
        y2 = jnp.sum(jnp.where(lane == 1, y, 0.0), axis=1, keepdims=True)
        y3 = jnp.sum(jnp.where(lane == 2, y, 0.0), axis=1, keepdims=True)
    else:
        # head_stride is a multiple of 128 -> lane-aligned static slices.
        y1 = y[:, 0 * head_stride:1 * head_stride]
        y2 = y[:, 1 * head_stride:2 * head_stride]
        y3 = y[:, 2 * head_stride:3 * head_stride]
    return y1 + y2 * y2 + y3 * y3 * y3


def _fullf_kernel(x_ref, w_ref, b_ref, o_ref, *, head_stride, compute_dtype):
    """Single-K path (F fully VMEM-resident): no accumulator scratch."""
    x = x_ref[...]
    if x.dtype != compute_dtype:
        x = x.astype(compute_dtype)          # cast in-kernel: x read from HBM once
    y = jnp.dot(x, w_ref[...], preferred_element_type=jnp.float32) + b_ref[...]
    o_ref[...] = _extract_heads(y, head_stride).astype(o_ref.dtype)


def _ktiled_kernel(x_ref, w_ref, b_ref, o_ref, acc_ref, *,
                   head_stride, compute_dtype):
    """Fallback for huge F: K-reduction grid axis with f32 VMEM accumulator.

    Note: W blocks change every grid step here, so W is re-streamed per batch
    tile; this path is only selected when F is too large to keep resident.
    """
    k = pl.program_id(1)
    x = x_ref[...]
    if x.dtype != compute_dtype:
        x = x.astype(compute_dtype)
    part = jnp.dot(x, w_ref[...], preferred_element_type=jnp.float32)

    @pl.when(k == 0)
    def _assign():                            # direct assign: no zero-init pass
        acc_ref[...] = part

    @pl.when(k != 0)
    def _accumulate():
        acc_ref[...] = acc_ref[...] + part

    @pl.when(k == pl.num_programs(1) - 1)
    def _finalize():
        y = acc_ref[...] + b_ref[...]
        o_ref[...] = _extract_heads(y, head_stride).astype(o_ref.dtype)


def trinomial_regression(x, w1, b1, w2, b2, w3, b3, *,
                         compute_dtype=None, block_b=2048, block_k=512):
    """x: [B, F]; wi: [F, O]; bi: [O].  Returns torch-style .squeeze() result."""
    B, F = x.shape
    O = w1.shape[1]
    out_dtype = x.dtype
    if compute_dtype is None:
        compute_dtype = x.dtype
    compute_dtype = jax.dtypes.canonicalize_dtype(compute_dtype)

    # ---- pack the three heads into one column block --------------------------
    if O == 1:
        head_stride = 1                      # heads at lanes 0,1,2
        o_block = 128
        out_width = 1                        # width-O writeback (full-dim block)
        w_cat = jnp.concatenate([w1, w2, w3], axis=1)           # [F, 3]
        b_cat = jnp.concatenate([b1, b2, b3], axis=0)           # [3]
    else:
        head_stride = _round_up(O, 128)      # lane-aligned heads
        o_block = 3 * head_stride
        out_width = head_stride              # lane-dense padded writeback
        pad_o = head_stride - O
        w_cat = jnp.concatenate(
            [jnp.pad(w, ((0, 0), (0, pad_o))) for w in (w1, w2, w3)], axis=1)
        b_cat = jnp.concatenate(
            [jnp.pad(b, ((0, pad_o),)) for b in (b1, b2, b3)], axis=0)

    w_packed = jnp.pad(w_cat.astype(compute_dtype),
                       ((0, 0), (0, o_block - w_cat.shape[1])))
    b_packed = jnp.pad(b_cat.astype(jnp.float32),
                       ((0, o_block - b_cat.shape[0]),)).reshape(1, o_block)

    x_bytes = x.dtype.itemsize
    w_bytes = compute_dtype.itemsize
    out_bytes = jnp.dtype(out_dtype).itemsize

    def fullf_vmem(tb_):
        return (2 * tb_ * F * x_bytes             # x (double-buffered)
                + 2 * F * o_block * w_bytes       # packed W (resident)
                + 2 * o_block * 4                 # bias
                + 2 * tb_ * out_width * out_bytes)

    tb = _pick_batch_tile(B, block_b)

    if fullf_vmem(8) <= _VMEM_BUDGET:
        # ---- common path: full F resident, single "parallel" batch axis ------
        while tb > 8 and fullf_vmem(tb) > _VMEM_BUDGET:
            tb = max(8, _round_up(tb // 2, 8))
        out = pl.pallas_call(
            functools.partial(_fullf_kernel, head_stride=head_stride,
                              compute_dtype=compute_dtype),
            out_shape=jax.ShapeDtypeStruct((B, out_width), out_dtype),
            grid=(pl.cdiv(B, tb),),
            in_specs=[
                pl.BlockSpec((tb, F), lambda i: (i, 0)),          # x streamed
                pl.BlockSpec((F, o_block), lambda i: (0, 0)),     # W resident
                pl.BlockSpec((1, o_block), lambda i: (0, 0)),     # bias resident
            ],
            out_specs=pl.BlockSpec((tb, out_width), lambda i: (i, 0)),
            compiler_params=pltpu.CompilerParams(
                dimension_semantics=("parallel",),
                vmem_limit_bytes=_VMEM_LIMIT),
        )(x, w_packed, b_packed)
    else:
        # ---- huge-F fallback: K-tiled accumulator (only here is F padded) ----
        tk = block_k
        f_pad = _round_up(F, tk)

        def ktiled_vmem(tb_):
            return (2 * tb_ * tk * x_bytes + 2 * tk * o_block * w_bytes
                    + 2 * o_block * 4 + 2 * tb_ * out_width * out_bytes
                    + tb_ * o_block * 4)

        while tb > 8 and ktiled_vmem(tb) > _VMEM_BUDGET:
            tb = max(8, _round_up(tb // 2, 8))
        x_p = jnp.pad(x, ((0, 0), (0, f_pad - F)))        # native dtype, F only
        w_p = jnp.pad(w_packed, ((0, f_pad - F), (0, 0)))
        out = pl.pallas_call(
            functools.partial(_ktiled_kernel, head_stride=head_stride,
                              compute_dtype=compute_dtype),
            out_shape=jax.ShapeDtypeStruct((B, out_width), out_dtype),
            grid=(pl.cdiv(B, tb), f_pad // tk),
            in_specs=[
                pl.BlockSpec((tb, tk), lambda i, k: (i, k)),
                pl.BlockSpec((tk, o_block), lambda i, k: (k, 0)),
                pl.BlockSpec((1, o_block), lambda i, k: (0, 0)),
            ],
            out_specs=pl.BlockSpec((tb, out_width), lambda i, k: (i, 0)),
            scratch_shapes=[pltpu.VMEM((tb, o_block), jnp.float32)],
            compiler_params=pltpu.CompilerParams(
                dimension_semantics=("parallel", "arbitrary"),
                vmem_limit_bytes=_VMEM_LIMIT),
        )(x_p, w_p, b_packed)

    # Drop head-padding columns (O > 1 path), then match torch .squeeze(),
    # which drops ALL size-1 dims (including B == 1) -- intentional.
    return jnp.squeeze(out[:, :O])


def _init_linear(key, num_features, num_outputs, dtype=jnp.float32):
    # Deterministic init mirroring nn.Linear's uniform(-1/sqrt(F), 1/sqrt(F)).
    kw, kb = jax.random.split(key)
    bound = 1.0 / jnp.sqrt(jnp.array(num_features, dtype))
    w = jax.random.uniform(kw, (num_features, num_outputs), dtype,
                           minval=-bound, maxval=bound)
    b = jax.random.uniform(kb, (num_outputs,), dtype,
                           minval=-bound, maxval=bound)
    return w, b


if __name__ == "__main__":
    key = jax.random.PRNGKey(0)
    k_x, k1, k2, k3 = jax.random.split(key, 4)

    batch = 8
    num_features = 32
    num_outputs = 1

    x = jax.random.normal(k_x, (batch, num_features), jnp.float32)
    w1, b1 = _init_linear(k1, num_features, num_outputs)
    w2, b2 = _init_linear(k2, num_features, num_outputs)
    w3, b3 = _init_linear(k3, num_features, num_outputs)

    # Plain-JAX reference mirroring the torch forward.
    y1 = x @ w1 + b1
    y2 = x @ w2 + b2
    y3 = x @ w3 + b3
    ref = jnp.squeeze(y1 + y2 ** 2 + y3 ** 3)

    # Default (input-dtype, f32) compute path.
    out_f32 = trinomial_regression(x, w1, b1, w2, b2, w3, b3)
    jax.block_until_ready(out_f32)
    assert out_f32.shape == ref.shape, (out_f32.shape, ref.shape)
    assert jnp.allclose(out_f32, ref, atol=1e-2, rtol=1e-2), \
        float(jnp.max(jnp.abs(out_f32 - ref)))

    # bf16 MXU fast path (f32 accumulation + f32 epilogue): looser check.
    out_bf16 = trinomial_regression(x, w1, b1, w2, b2, w3, b3,
                                    compute_dtype=jnp.bfloat16)
    jax.block_until_ready(out_bf16)
    assert out_bf16.shape == ref.shape
    assert jnp.allclose(out_bf16, ref, atol=5e-2, rtol=5e-2), \
        float(jnp.max(jnp.abs(out_bf16 - ref)))

    print("KERNEL_OK")
</pallas_src>

<mosaic_0001>
module attributes {stable_mosaic.version = 11 : i64} {
  func.func @_fullf_kernel(%arg0: i32, %arg1: memref<8x32xf32, #tpu.memory_space<vmem>>, %arg2: memref<32x128xf32, #tpu.memory_space<vmem>>, %arg3: memref<1x128xf32, #tpu.memory_space<vmem>>, %arg4: memref<8x1xf32, #tpu.memory_space<vmem>>) attributes {dimension_semantics = [#tpu.dimension_semantics<parallel>], iteration_bounds = array<i64: 1>, scalar_prefetch = 0 : i64, scratch_operands = 0 : i64, tpu.core_type = #tpu.core_type<tc>, window_params = [{transform_indices = @transform_0, window_bounds = array<i64: 8, 32>}, {pipeline_mode = #tpu.pipeline_mode<synchronous>, transform_indices = @transform_1, window_bounds = array<i64: 32, 128>}, {pipeline_mode = #tpu.pipeline_mode<synchronous>, transform_indices = @transform_2, window_bounds = array<i64: 1, 128>}, {transform_indices = @transform_3, window_bounds = array<i64: 8, 1>}]} {
    %c0 = arith.constant 0 : index
    %c0_0 = arith.constant 0 : index
    %0 = vector.load %arg1[%c0, %c0_0] : memref<8x32xf32, #tpu.memory_space<vmem>>, vector<8x32xf32>
    %c0_1 = arith.constant 0 : index
    %c0_2 = arith.constant 0 : index
    %1 = vector.load %arg2[%c0_1, %c0_2] : memref<32x128xf32, #tpu.memory_space<vmem>>, vector<32x128xf32>
    %cst = arith.constant dense<0.000000e+00> : vector<8x128xf32>
    %2 = tpu.matmul %0, %1, %cst {dimension_numbers = #tpu.dot_dimension_numbers<[1], [0], [0], [1], [0, 0, 1, 1], [], []>} : vector<8x32xf32>, vector<32x128xf32>, vector<8x128xf32> -> vector<8x128xf32>
    %c0_3 = arith.constant 0 : index
    %c0_4 = arith.constant 0 : index
    %3 = vector.load %arg3[%c0_3, %c0_4] : memref<1x128xf32, #tpu.memory_space<vmem>>, vector<1x128xf32>
    %4 = vector.broadcast %3 : vector<1x128xf32> to vector<8x128xf32>
    %5 = arith.addf %2, %4 : vector<8x128xf32>
    %6 = tpu.iota {dimensions = array<i32: 1>} : vector<8x128xi32>
    %c0_i32 = arith.constant 0 : i32
    %7 = vector.broadcast %c0_i32 : i32 to vector<8x128xi32>
    %8 = arith.cmpi eq, %6, %7 : vector<8x128xi32>
    %cst_5 = arith.constant 0.000000e+00 : f32
    %9 = vector.broadcast %cst_5 : f32 to vector<8x128xf32>
    %10 = arith.select %8, %5, %9 : vector<8x128xi1>, vector<8x128xf32>
    %cst_6 = arith.constant dense<0.000000e+00> : vector<8xf32>
    %11 = vector.multi_reduction <add>, %10, %cst_6 [1] : vector<8x128xf32> to vector<8xf32>
    %12 = vector.shape_cast %11 : vector<8xf32> to vector<8x1xf32>
    %c1_i32 = arith.constant 1 : i32
    %13 = vector.broadcast %c1_i32 : i32 to vector<8x128xi32>
    %14 = arith.cmpi eq, %6, %13 : vector<8x128xi32>
    %cst_7 = arith.constant 0.000000e+00 : f32
    %15 = vector.broadcast %cst_7 : f32 to vector<8x128xf32>
    %16 = arith.select %14, %5, %15 : vector<8x128xi1>, vector<8x128xf32>
    %cst_8 = arith.constant dense<0.000000e+00> : vector<8xf32>
    %17 = vector.multi_reduction <add>, %16, %cst_8 [1] : vector<8x128xf32> to vector<8xf32>
    %18 = vector.shape_cast %17 : vector<8xf32> to vector<8x1xf32>
    %c2_i32 = arith.constant 2 : i32
    %19 = vector.broadcast %c2_i32 : i32 to vector<8x128xi32>
    %20 = arith.cmpi eq, %6, %19 : vector<8x128xi32>
    %cst_9 = arith.constant 0.000000e+00 : f32
    %21 = vector.broadcast %cst_9 : f32 to vector<8x128xf32>
    %22 = arith.select %20, %5, %21 : vector<8x128xi1>, vector<8x128xf32>
    %cst_10 = arith.constant dense<0.000000e+00> : vector<8xf32>
    %23 = vector.multi_reduction <add>, %22, %cst_10 [1] : vector<8x128xf32> to vector<8xf32>
    %24 = vector.shape_cast %23 : vector<8xf32> to vector<8x1xf32>
    %25 = arith.mulf %18, %18 : vector<8x1xf32>
    %26 = arith.addf %12, %25 : vector<8x1xf32>
    %27 = arith.mulf %24, %24 : vector<8x1xf32>
    %28 = arith.mulf %27, %24 : vector<8x1xf32>
    %29 = arith.addf %26, %28 : vector<8x1xf32>
    %c0_11 = arith.constant 0 : index
    %c0_12 = arith.constant 0 : index
    %30 = vector.load %arg4[%c0_11, %c0_12] : memref<8x1xf32, #tpu.memory_space<vmem>>, vector<8x1xf32>
    tpu.vector_store %arg4[%c0_11, %c0_12], %29 {strides = array<i32>} : memref<8x1xf32, #tpu.memory_space<vmem>>, vector<8x1xf32>,
    return
  }
  func.func @transform_0(%arg0: i32) -> (i32, i32) {
    %c0_i32 = arith.constant 0 : i32
    %c0_i32_0 = arith.constant 0 : i32
    return %arg0, %c0_i32 : i32, i32
  }
  func.func @transform_1(%arg0: i32) -> (i32, i32) {
    %c0_i32 = arith.constant 0 : i32
    %c0_i32_0 = arith.constant 0 : i32
    %c0_i32_1 = arith.constant 0 : i32
    return %c0_i32, %c0_i32_0 : i32, i32
  }
  func.func @transform_2(%arg0: i32) -> (i32, i32) {
    %c0_i32 = arith.constant 0 : i32
    %c0_i32_0 = arith.constant 0 : i32
    %c0_i32_1 = arith.constant 0 : i32
    return %c0_i32, %c0_i32_0 : i32, i32
  }
  func.func @transform_3(%arg0: i32) -> (i32, i32) {
    %c0_i32 = arith.constant 0 : i32
    %c0_i32_0 = arith.constant 0 : i32
    return %arg0, %c0_i32 : i32, i32
  }
}

</mosaic_0001>

<llo_original>
// kernel: tpu_custom_call.1
$region0: #{tpu_custom_call.1}
  #allocation0 [shape = 'u32[]', space=smem, size = 0x4, offset = 0x4, fixed_abs, tag = 'smem constant byte address 0x4 - core index']
  #allocation1 [shape = 'u32[72,128]{1,0:T(1,128)}', space=vmem, size = 0x9000, scoped, tag = 'internal scratch']
  %s0 = inlined_call_operand.hbm [shape: f32[8,32], index: 0, kind: input, shape index: {}]
  %s1 = inlined_call_operand.hbm [shape: f32[32,128], index: 1, kind: input, shape index: {}]
  %s2 = inlined_call_operand.vmem [shape: f32[1,128], index: 2, kind: input, shape index: {}]
  %s3 = inlined_call_operand.vmem [shape: f32[8,1], index: 3, kind: output, shape index: {}]
  %s4 = sld [smem:[#allocation0]]
  $region30: #{tpu_custom_call.1} parent=0
    _
  %s6 = ssub.s32 1, %s4
  %s7 = scalar_select 0, %s6, %s4
  $region1: #{tpu_custom_call.1} parent=0
    #allocation2 [shape = 'u8[4096]{0}', space=vmem, size = 0x1000, scoped, tag = 'input window, operand 0, single buffered']
    #allocation3 [shape = 's32[1]{0}', space=sflag, size = 0x4, scoped, tag = 'scoped memory for tpu_custom_call.1']
    #allocation4 [shape = 'u8[16384]{0}', space=vmem, size = 0x4000, scoped, tag = 'input window, operand 1, single buffered']
    #allocation5 [shape = 's32[1]{0}', space=sflag, size = 0x4, scoped, tag = 'scoped memory for tpu_custom_call.1']
    %8 = vsyncpa [#allocation3], 0
    %9 = vsyncpa [#allocation5], 0
    // Predicated region
    $region2: #{tpu_custom_call.1} parent=1 // pred_check
      _
    $region3: #{tpu_custom_call.1} parent=1 // pred_check_branch
      %11 = sbr.rel (0) target = $region5
    $region4: #{tpu_custom_call.1} parent=1 // pred_region
      %13 = vsyncadd [#allocation3], 0
      %s15 = sshll.u32 %s0, 4
      %s16 = int_to_ptr.hbm [resolvable:$true] %s15
      %s17 = sshll.u32 [#allocation2], 4
      %s18 = int_to_ptr.vmem [resolvable:$true] %s17
      %20 = dma.hbm_to_vmem [thread:$0]  %s16, 128, %s18, [#allocation3]
    $region5: #{tpu_custom_call.1} parent=1 // pred_fallthru
      _
    // Predicated region
    $region6: #{tpu_custom_call.1} parent=1 // pred_check
      _
    $region7: #{tpu_custom_call.1} parent=1 // pred_check_branch
      %22 = sbr.rel (0) target = $region9
    $region8: #{tpu_custom_call.1} parent=1 // pred_region
      %24 = vsyncadd [#allocation5], 0
      %s25 = sshll.u32 %s1, 4
      %s26 = int_to_ptr.hbm [resolvable:$true] %s25
      %s27 = sshll.u32 [#allocation4], 4
      %s28 = int_to_ptr.vmem [resolvable:$true] %s27
      %33 = dma.hbm_to_vmem [thread:$0]  %s26, 512, %s28, [#allocation5], 128, 128, 8
    $region9: #{tpu_custom_call.1} parent=1 // pred_fallthru
      _
    // Predicated region
    $region10: #{tpu_custom_call.1} parent=1 // pred_check
      _
    $region11: #{tpu_custom_call.1} parent=1 // pred_check_branch
      %35 = sbr.rel (0) target = $region13
    $region12: #{tpu_custom_call.1} parent=1 // pred_region
      _
    $region13: #{tpu_custom_call.1} parent=1 // pred_fallthru
      _
    // Predicated region
    $region14: #{tpu_custom_call.1} parent=1 // pred_check
      _
    $region15: #{tpu_custom_call.1} parent=1 // pred_check_branch
      %37 = sbr.rel (0) target = $region17
    $region16: #{tpu_custom_call.1} parent=1 // pred_region
      %39 = dma.done [#allocation3], 128
    $region17: #{tpu_custom_call.1} parent=1 // pred_fallthru
      _
    // Predicated region
    $region18: #{tpu_custom_call.1} parent=1 // pred_check
      _
    $region19: #{tpu_custom_call.1} parent=1 // pred_check_branch
      %41 = sbr.rel (0) target = $region21
    $region20: #{tpu_custom_call.1} parent=1 // pred_region
      %43 = dma.done [#allocation5], 512
    $region21: #{tpu_custom_call.1} parent=1 // pred_fallthru
      _
    %v44 = vld [vmem:[#allocation2] sm:$0xff]
    %v45 = vld [vmem:[#allocation4] sm:$0xff]
    %v46 = vld [vmem:[#allocation4 + $0x8] sm:$0xff]
    %v47 = vld [vmem:[#allocation4 + $0x10] sm:$0xff]
    %v48 = vld [vmem:[#allocation4 + $0x18] sm:$0xff]
    %v49 = vld [vmem:[%s2] sm:$0x1]
    %v51 = vperm.slane %v49, 0
    %vm53 = vcmask 261120
    %v55 = vsel %vm53, %v44, 0
    %57 = vmatpush.msra.mxu0 0.0
    %58 = vmatpush.msra.mxu0 0.0
    %59 = vmatpush.msra.mxu0 0.0
    %60 = vmatpush.msra.mxu0 0.0
    %61 = vmatpush.msra.mxu0 0.0
    %62 = vmatpush.msra.mxu0 0.0
    %63 = vmatpush.msra.mxu0 0.0
    %64 = vmatpush.msra.mxu0 0.0
    %65 = vmatpush.msra.mxu0 0.0
    %66 = vmatpush.msra.mxu0 0.0
    %67 = vmatpush.msra.mxu0 0.0
    %68 = vmatpush.msra.mxu0 0.0
    %69 = vmatpush.msra.mxu0 %v48
    %70 = vmatpush.msra.mxu0 %v47
    %71 = vmatpush.msra.mxu0 %v46
    %72 = vmatpush.msra.mxu0 %v45
    %73 = vmatmul.f32.gmra.mxu0 %v55
    %v74 = vpop.f32.mrf.mxu0
    %v75 = vadd.f32 %v51, %v74
    %76 = vdwg.mxu0
    %v77 = vlaneseq
    %v78 = vand.u32 %v77, 127
    %vm79 = vcmp.eq.s32.totalorder %v78, 0
    %v80 = vsel %vm79, %v75, 0.0
    %81 = vadd.xlane.f32.xlu0 %v80
    %v82 = vpop.xlane.xlu0 %81
    %vm83 = vcmp.eq.s32.totalorder %v78, 1
    %v84 = vsel %vm83, %v75, 0.0
    %85 = vadd.xlane.f32.xlu0 %v84
    %v86 = vpop.xlane.xlu0 %85
    %vm87 = vcmp.eq.s32.totalorder %v78, 2
    %v88 = vsel %vm87, %v75, 0.0
    %89 = vadd.xlane.f32.xlu0 %v88
    %v90 = vpop.xlane.xlu0 %89
    %v91 = vmul.f32 %v86, %v86
    %v92 = vadd.f32 %v82, %v91
    %v93 = vmul.f32 %v90, %v90
    %v94 = vmul.f32 %v93, %v90
    %v95 = vadd.f32 %v92, %v94
    %vm96 = vcmask 7168
    %97 = vst.msk [vmem:[%s3] sm:$0xff] %vm96, %v95
    // Predicated region
    $region22: #{tpu_custom_call.1} parent=1 // pred_check
      _
    $region23: #{tpu_custom_call.1} parent=1 // pred_check_branch
      %99 = sbr.rel (0) target = $region25
    $region24: #{tpu_custom_call.1} parent=1 // pred_region
      _
    $region25: #{tpu_custom_call.1} parent=1 // pred_fallthru
      _
    // Predicated region
    $region26: #{tpu_custom_call.1} parent=1 // pred_check
      _
    $region27: #{tpu_custom_call.1} parent=1 // pred_check_branch
      %101 = sbr.rel (0) target = $region29
    $region28: #{tpu_custom_call.1} parent=1 // pred_region
      _
    $region29: #{tpu_custom_call.1} parent=1 // pred_fallthru
      _
    %102 = vsyncpa [#allocation3], 1
    %103 = vsyncpa [#allocation5], 1

</llo_original>
